<compile_context>
chip_gen: v7x
topology: tpu7x:2x2x1
jax: 0.10.0
libtpu: 0.0.40
codegen_flags: <defaults>
</compile_context>

<pallas_src>
import functools

import jax
import jax.numpy as jnp
from jax.experimental import pallas as pl
from jax.experimental.pallas import tpu as pltpu

EPS = 1e-6
_LANE = 128
_SUBLANE = 8


def _cdiv(a, b):
    return -(-a // b)


def _round_up(a, b):
    return _cdiv(a, b) * b


def _dice_partial_kernel(x_ref, t_ref, inter_ref, psq_ref, tsq_ref, *,
                         hw, blk, ct_half, need_mask):
    """Grid = (row_tiles, halves, col_tiles); the col axis is the reduction.

    x_ref, t_ref : (R, blk) block of logits / targets; rows are (n, c) pairs.
    inter/psq/tsq: (1, R, 1) partial-sum blocks, resident across the col axis.
    """
    h = pl.program_id(1)
    j = pl.program_id(2)

    @pl.when(j == 0)
    def _():
        inter_ref[...] = jnp.zeros_like(inter_ref)
        psq_ref[...] = jnp.zeros_like(psq_ref)
        tsq_ref[...] = jnp.zeros_like(tsq_ref)

    x = x_ref[...].astype(jnp.float32)
    t = t_ref[...].astype(jnp.float32)
    # sigmoid(x) == 0.5 * tanh(x / 2) + 0.5  ->  one EUP push per vreg instead
    # of a possible exp + reciprocal expansion.
    p = 0.5 * jnp.tanh(0.5 * x) + 0.5

    def _accumulate(pv, tv):
        inter_ref[...] += jnp.sum(pv * tv, axis=-1, keepdims=True)[None]
        psq_ref[...] += jnp.sum(pv * pv, axis=-1, keepdims=True)[None]
        tsq_ref[...] += jnp.sum(tv * tv, axis=-1, keepdims=True)[None]

    if need_mask:
        tile = h * ct_half + j                 # un-clamped logical column tile
        is_edge = (tile + 1) * blk > hw        # this step touches the tail

        @pl.when(is_edge)
        def _():
            col = tile * blk + jax.lax.broadcasted_iota(jnp.int32, x.shape, 1)
            valid = col < hw
            _accumulate(jnp.where(valid, p, 0.0), jnp.where(valid, t, 0.0))

        @pl.when(jnp.logical_not(is_edge))
        def _():
            _accumulate(p, t)
    else:
        _accumulate(p, t)


@functools.partial(jax.jit, static_argnames=("block_bytes",))
def abstract_dice_loss(input_ncs, target_ncs, block_bytes=4 * 1024 * 1024):
    """Equivalent of _AbstractDiceLoss(weight=None, sigmoid_normalization=True)
    .forward(input, target, voxelwise_weight=None).  Returns a scalar.

    Accepts (N, C, *spatial) tensors (any number of spatial dims)."""
    assert target_ncs.shape == input_ncs.shape
    n, c = input_ncs.shape[:2]
    hw = 1
    for d in input_ncs.shape[2:]:
        hw *= d
    nc = n * c

    # Free reshape of the natural NC* layout; no pad, no transpose, no copy.
    x = input_ncs.reshape(nc, hw)
    t = target_ncs.reshape(nc, hw)

    # ---- tile sizing -------------------------------------------------------
    # Column (voxel) tile: multiple of 128 lanes, sized so an 8-sublane f32
    # block stays within `block_bytes`.  If the whole voxel axis fits in one
    # tile, take it exactly (block dim == array dim: no alignment, no masking).
    lane_cap = max(_LANE, (block_bytes // (_SUBLANE * 4)) // _LANE * _LANE)
    blk = hw if hw <= lane_cap else lane_cap
    ct_total = _cdiv(hw, blk)

    # Row tile: multiples of 8 (n,c) rows fill the f32 sublane dim exactly;
    # widen it when the voxel axis fits in one column tile and budget remains.
    if nc < _SUBLANE:
        r_tile = nc
    else:
        rows8_bytes = _SUBLANE * _round_up(blk, _LANE) * 4
        r_tile = _SUBLANE * max(1, min(block_bytes // rows8_bytes,
                                       _cdiv(nc, _SUBLANE)))
    num_rt = _cdiv(nc, r_tile)
    rows_padded = num_rt * r_tile

    # Split the reduction axis into 2 independent "parallel" halves when the
    # row axis alone cannot feed both v7x TensorCores evenly.
    halves = 2 if (num_rt % 2 == 1 and ct_total >= 2) else 1
    ct_half = _cdiv(ct_total, halves)
    need_mask = halves * ct_half * blk > hw

    grid = (num_rt, halves, ct_half)

    def in_map(i, h, j):
        # Clamp so a (rare) fully-out-of-range tile of the last half re-reads
        # the final real tile; its contribution is masked to zero in-kernel.
        return (i, jnp.minimum(h * ct_half + j, ct_total - 1))

    in_spec = pl.BlockSpec((r_tile, blk), in_map)
    out_spec = pl.BlockSpec((1, r_tile, 1), lambda i, h, j: (h, i, 0))
    out_sds = jax.ShapeDtypeStruct((halves, rows_padded, 1), jnp.float32)

    kernel = functools.partial(_dice_partial_kernel, hw=hw, blk=blk,
                               ct_half=ct_half, need_mask=need_mask)

    # 2 inputs x 2 pipeline buffers (f32, sublane-padded) + generous headroom
    # for outputs / internal scratch.  Explicit so v5e's 16 MiB scoped default
    # never bites and v7x's 64 MiB physical VMEM is respected.
    buf_bytes = _round_up(r_tile, _SUBLANE) * _round_up(blk, _LANE) * 4
    vmem_limit = 4 * buf_bytes + 8 * 1024 * 1024

    inter_p, psq_p, tsq_p = pl.pallas_call(
        kernel,
        out_shape=(out_sds, out_sds, out_sds),
        grid_spec=pltpu.PrefetchScalarGridSpec(
            num_scalar_prefetch=0,
            grid=grid,
            in_specs=[in_spec, in_spec],
            out_specs=[out_spec, out_spec, out_spec],
        ),
        compiler_params=pltpu.CompilerParams(
            dimension_semantics=("parallel", "parallel", "arbitrary"),
            vmem_limit_bytes=vmem_limit,
        ),
    )(x, t)

    # Tiny epilogue in plain JAX: combine halves / rows, per-channel dice,
    # and 1 - mean.  Padded (garbage) rows beyond nc are sliced away.
    def _combine(a):
        return a.sum(axis=0)[:nc, 0].reshape(n, c).sum(axis=0)      # (C,)

    intersect = _combine(inter_p)
    denom = _combine(psq_p) + _combine(tsq_p)
    per_channel_dice = 2.0 * intersect / jnp.maximum(denom, EPS)
    return 1.0 - jnp.mean(per_channel_dice)


def _reference(logits, target):
    """Pure-JAX reference of the same forward pass."""
    n, c = logits.shape[:2]
    p = jax.nn.sigmoid(logits.astype(jnp.float32))
    t = target.astype(jnp.float32)
    p = jnp.moveaxis(p, 1, 0).reshape(c, -1)
    t = jnp.moveaxis(t, 1, 0).reshape(c, -1)
    intersect = jnp.sum(p * t, axis=-1)
    denom = jnp.maximum(jnp.sum(p * p, axis=-1) + jnp.sum(t * t, axis=-1), EPS)
    return 1.0 - jnp.mean(2.0 * intersect / denom)


if __name__ == "__main__":
    cases = [
        # (shape, block_bytes)
        ((2, 4, 16, 16), 4 * 1024 * 1024),        # main example
        ((1, 3, 15, 15), 4 * 1024 * 1024),        # non-128-aligned voxels, nc<8
        ((3, 4, 10, 13), 4 * 1024 * 1024),        # ragged (n*c) row tail
        ((1, 4, 40, 24, 24), 256 * 1024),         # multi-tile reduce: split+mask
    ]
    keys = jax.random.split(jax.random.PRNGKey(0), 2 * len(cases))
    for idx, (shape, bb) in enumerate(cases):
        k1, k2 = keys[2 * idx], keys[2 * idx + 1]
        logits = jax.random.normal(k1, shape, dtype=jnp.float32)
        target = (jax.random.uniform(k2, shape) > 0.5).astype(jnp.float32)

        loss = abstract_dice_loss(logits, target, block_bytes=bb)
        jax.block_until_ready(loss)

        ref = _reference(logits, target)
        assert jnp.allclose(loss, ref, atol=1e-5, rtol=1e-5), (shape, loss, ref)

    print("KERNEL_OK")
</pallas_src>

<mosaic_0001>
module attributes {stable_mosaic.version = 11 : i64} {
  func.func @_dice_partial_kernel(%arg0: i32, %arg1: i32, %arg2: i32, %arg3: memref<8x256xf32, #tpu.memory_space<vmem>>, %arg4: memref<8x256xf32, #tpu.memory_space<vmem>>, %arg5: memref<1x8x1xf32, #tpu.memory_space<vmem>>, %arg6: memref<1x8x1xf32, #tpu.memory_space<vmem>>, %arg7: memref<1x8x1xf32, #tpu.memory_space<vmem>>) attributes {dimension_semantics = [#tpu.dimension_semantics<parallel>, #tpu.dimension_semantics<parallel>, #tpu.dimension_semantics<arbitrary>], iteration_bounds = array<i64: 1, 1, 1>, scalar_prefetch = 0 : i64, scratch_operands = 0 : i64, tpu.core_type = #tpu.core_type<tc>, window_params = [{transform_indices = @transform_0, window_bounds = array<i64: 8, 256>}, {transform_indices = @transform_1, window_bounds = array<i64: 8, 256>}, {transform_indices = @transform_2, window_bounds = array<i64: 1, 8, 1>}, {transform_indices = @transform_3, window_bounds = array<i64: 1, 8, 1>}, {transform_indices = @transform_4, window_bounds = array<i64: 1, 8, 1>}]} {
    %c0_i32 = arith.constant 0 : i32
    %0 = arith.cmpi eq, %arg2, %c0_i32 : i32
    %1 = arith.extui %0 : i1 to i32
    %c0_i32_0 = arith.constant 0 : i32
    %2 = arith.cmpi ne, %1, %c0_i32_0 : i32
    scf.if %2 {
      %cst_27 = arith.constant 0.000000e+00 : f32
      %33 = vector.broadcast %cst_27 : f32 to vector<1x8x1xf32>
      %c0_28 = arith.constant 0 : index
      %c0_29 = arith.constant 0 : index
      %c0_30 = arith.constant 0 : index
      %34 = vector.load %arg5[%c0_28, %c0_29, %c0_30] : memref<1x8x1xf32, #tpu.memory_space<vmem>>, vector<1x8x1xf32>
      tpu.vector_store %arg5[%c0_28, %c0_29, %c0_30], %33 {strides = array<i32>} : memref<1x8x1xf32, #tpu.memory_space<vmem>>, vector<1x8x1xf32>,
      %cst_31 = arith.constant 0.000000e+00 : f32
      %35 = vector.broadcast %cst_31 : f32 to vector<1x8x1xf32>
      %c0_32 = arith.constant 0 : index
      %c0_33 = arith.constant 0 : index
      %c0_34 = arith.constant 0 : index
      %36 = vector.load %arg6[%c0_32, %c0_33, %c0_34] : memref<1x8x1xf32, #tpu.memory_space<vmem>>, vector<1x8x1xf32>
      tpu.vector_store %arg6[%c0_32, %c0_33, %c0_34], %35 {strides = array<i32>} : memref<1x8x1xf32, #tpu.memory_space<vmem>>, vector<1x8x1xf32>,
      %cst_35 = arith.constant 0.000000e+00 : f32
      %37 = vector.broadcast %cst_35 : f32 to vector<1x8x1xf32>
      %c0_36 = arith.constant 0 : index
      %c0_37 = arith.constant 0 : index
      %c0_38 = arith.constant 0 : index
      %38 = vector.load %arg7[%c0_36, %c0_37, %c0_38] : memref<1x8x1xf32, #tpu.memory_space<vmem>>, vector<1x8x1xf32>
      tpu.vector_store %arg7[%c0_36, %c0_37, %c0_38], %37 {strides = array<i32>} : memref<1x8x1xf32, #tpu.memory_space<vmem>>, vector<1x8x1xf32>,
    } else {
    }
    %c0 = arith.constant 0 : index
    %c0_1 = arith.constant 0 : index
    %3 = vector.load %arg3[%c0, %c0_1] : memref<8x256xf32, #tpu.memory_space<vmem>>, vector<8x256xf32>
    %c0_2 = arith.constant 0 : index
    %c0_3 = arith.constant 0 : index
    %4 = vector.load %arg4[%c0_2, %c0_3] : memref<8x256xf32, #tpu.memory_space<vmem>>, vector<8x256xf32>
    %cst = arith.constant 5.000000e-01 : f32
    %5 = vector.broadcast %cst : f32 to vector<8x256xf32>
    %6 = arith.mulf %5, %3 : vector<8x256xf32>
    %7 = math.tanh %6 : vector<8x256xf32>
    %cst_4 = arith.constant 5.000000e-01 : f32
    %8 = vector.broadcast %cst_4 : f32 to vector<8x256xf32>
    %9 = arith.mulf %8, %7 : vector<8x256xf32>
    %cst_5 = arith.constant 5.000000e-01 : f32
    %10 = vector.broadcast %cst_5 : f32 to vector<8x256xf32>
    %11 = arith.addf %9, %10 : vector<8x256xf32>
    %c0_6 = arith.constant 0 : index
    %c0_7 = arith.constant 0 : index
    %c0_8 = arith.constant 0 : index
    %12 = vector.load %arg5[%c0_6, %c0_7, %c0_8] : memref<1x8x1xf32, #tpu.memory_space<vmem>>, vector<1x8x1xf32>
    %13 = arith.mulf %11, %4 : vector<8x256xf32>
    %cst_9 = arith.constant dense<0.000000e+00> : vector<8xf32>
    %14 = vector.multi_reduction <add>, %13, %cst_9 [1] : vector<8x256xf32> to vector<8xf32>
    %15 = vector.shape_cast %14 : vector<8xf32> to vector<8x1xf32>
    %16 = vector.shape_cast %15 : vector<8x1xf32> to vector<1x8x1xf32>
    %17 = arith.addf %12, %16 : vector<1x8x1xf32>
    %c0_10 = arith.constant 0 : index
    %c0_11 = arith.constant 0 : index
    %c0_12 = arith.constant 0 : index
    %18 = vector.load %arg5[%c0_10, %c0_11, %c0_12] : memref<1x8x1xf32, #tpu.memory_space<vmem>>, vector<1x8x1xf32>
    tpu.vector_store %arg5[%c0_10, %c0_11, %c0_12], %17 {strides = array<i32>} : memref<1x8x1xf32, #tpu.memory_space<vmem>>, vector<1x8x1xf32>,
    %c0_13 = arith.constant 0 : index
    %c0_14 = arith.constant 0 : index
    %c0_15 = arith.constant 0 : index
    %19 = vector.load %arg6[%c0_13, %c0_14, %c0_15] : memref<1x8x1xf32, #tpu.memory_space<vmem>>, vector<1x8x1xf32>
    %20 = arith.mulf %11, %11 : vector<8x256xf32>
    %cst_16 = arith.constant dense<0.000000e+00> : vector<8xf32>
    %21 = vector.multi_reduction <add>, %20, %cst_16 [1] : vector<8x256xf32> to vector<8xf32>
    %22 = vector.shape_cast %21 : vector<8xf32> to vector<8x1xf32>
    %23 = vector.shape_cast %22 : vector<8x1xf32> to vector<1x8x1xf32>
    %24 = arith.addf %19, %23 : vector<1x8x1xf32>
    %c0_17 = arith.constant 0 : index
    %c0_18 = arith.constant 0 : index
    %c0_19 = arith.constant 0 : index
    %25 = vector.load %arg6[%c0_17, %c0_18, %c0_19] : memref<1x8x1xf32, #tpu.memory_space<vmem>>, vector<1x8x1xf32>
    tpu.vector_store %arg6[%c0_17, %c0_18, %c0_19], %24 {strides = array<i32>} : memref<1x8x1xf32, #tpu.memory_space<vmem>>, vector<1x8x1xf32>,
    %c0_20 = arith.constant 0 : index
    %c0_21 = arith.constant 0 : index
    %c0_22 = arith.constant 0 : index
    %26 = vector.load %arg7[%c0_20, %c0_21, %c0_22] : memref<1x8x1xf32, #tpu.memory_space<vmem>>, vector<1x8x1xf32>
    %27 = arith.mulf %4, %4 : vector<8x256xf32>
    %cst_23 = arith.constant dense<0.000000e+00> : vector<8xf32>
    %28 = vector.multi_reduction <add>, %27, %cst_23 [1] : vector<8x256xf32> to vector<8xf32>
    %29 = vector.shape_cast %28 : vector<8xf32> to vector<8x1xf32>
    %30 = vector.shape_cast %29 : vector<8x1xf32> to vector<1x8x1xf32>
    %31 = arith.addf %26, %30 : vector<1x8x1xf32>
    %c0_24 = arith.constant 0 : index
    %c0_25 = arith.constant 0 : index
    %c0_26 = arith.constant 0 : index
    %32 = vector.load %arg7[%c0_24, %c0_25, %c0_26] : memref<1x8x1xf32, #tpu.memory_space<vmem>>, vector<1x8x1xf32>
    tpu.vector_store %arg7[%c0_24, %c0_25, %c0_26], %31 {strides = array<i32>} : memref<1x8x1xf32, #tpu.memory_space<vmem>>, vector<1x8x1xf32>,
    return
  }
  func.func @transform_0(%arg0: i32, %arg1: i32, %arg2: i32) -> (i32, i32) {
    %c1_i32 = arith.constant 1 : i32
    %0 = arith.muli %arg1, %c1_i32 : i32
    %1 = arith.addi %0, %arg2 : i32
    %c0_i32 = arith.constant 0 : i32
    %2 = arith.minsi %1, %c0_i32 : i32
    %c0_i32_0 = arith.constant 0 : i32
    return %arg0, %2 : i32, i32
  }
  func.func @transform_1(%arg0: i32, %arg1: i32, %arg2: i32) -> (i32, i32) {
    %c1_i32 = arith.constant 1 : i32
    %0 = arith.muli %arg1, %c1_i32 : i32
    %1 = arith.addi %0, %arg2 : i32
    %c0_i32 = arith.constant 0 : i32
    %2 = arith.minsi %1, %c0_i32 : i32
    %c0_i32_0 = arith.constant 0 : i32
    return %arg0, %2 : i32, i32
  }
  func.func @transform_2(%arg0: i32, %arg1: i32, %arg2: i32) -> (i32, i32, i32) {
    %c0_i32 = arith.constant 0 : i32
    %c0_i32_0 = arith.constant 0 : i32
    return %arg1, %arg0, %c0_i32 : i32, i32, i32
  }
  func.func @transform_3(%arg0: i32, %arg1: i32, %arg2: i32) -> (i32, i32, i32) {
    %c0_i32 = arith.constant 0 : i32
    %c0_i32_0 = arith.constant 0 : i32
    return %arg1, %arg0, %c0_i32 : i32, i32, i32
  }
  func.func @transform_4(%arg0: i32, %arg1: i32, %arg2: i32) -> (i32, i32, i32) {
    %c0_i32 = arith.constant 0 : i32
    %c0_i32_0 = arith.constant 0 : i32
    return %arg1, %arg0, %c0_i32 : i32, i32, i32
  }
}

</mosaic_0001>

<llo_original>
// kernel: squeeze.3
$region0: #{squeeze.3}
  %s0 = inlined_call_operand.vmem [shape: f32[8], index: 0, kind: input, shape index: {}]
  %s1 = inlined_call_operand.vmem [shape: f32[2,4], index: 1, kind: output, shape index: {}]
  $region1: #{squeeze.3} parent=0
    #allocation0 [shape = 'u8[4096]{0}', space=vmem, size = 0x1000, scoped, tag = 'scoped mem for output reshape']
    #allocation1 [shape = 'u8[4096]{0}', space=vmem, size = 0x1000, scoped, tag = 'scoped mem for input reshape']
    %s3 = sshllo.u32 0, 1
    %v4 = vld [vmem:[%s0] sm:%s3]
    %5 = vst [vmem:[#allocation1] sm:%s3] %v4
    %v6 = vld [vmem:[#allocation1] sm:$0x1]
    %vm7 = vcmask 31744
    %8 = vst.msk [vmem:[#allocation0] sm:$0x1] %vm7, %v6
    %v9 = vld [vmem:[#allocation1] sm:$0x1]
    %10 = vrot.lane.b32.xlu0 %v9, 124
    %v11 = vpop.permute.xlu0 %10
    %vm12 = vcmask 31744
    %s13 = scalar_lea.vmem [#allocation0], 1
    %14 = vst.msk [vmem:[%s13] sm:$0x1] %vm12, %v11
    %s16 = sshllo.u32 0, 2
    %v18 = vld [vmem:[#allocation0] sm:%s16]
    %s19 = sshllo.u32 0, 2
    %20 = vst [vmem:[%s1] sm:%s19] %v18

// kernel: abstract_dice_loss.1
$region0: #{abstract_dice_loss.1}
  #allocation0 [shape = 'u32[]', space=smem, size = 0x4, offset = 0x4, fixed_abs, tag = 'smem constant byte address 0x4 - core index']
  #allocation1 [shape = 'u32[144,128]{1,0:T(1,128)}', space=vmem, size = 0x12000, scoped, tag = 'internal scratch']
  %s0 = inlined_call_operand.vmem [shape: f32[8,256], index: 0, kind: input, shape index: {}]
  %s1 = inlined_call_operand.vmem [shape: f32[8,256], index: 1, kind: input, shape index: {}]
  %s2 = inlined_call_operand.vmem [shape: f32[1,8,1], index: 2, kind: output, shape index: {0}]
  %s3 = inlined_call_operand.vmem [shape: f32[1,8,1], index: 3, kind: output, shape index: {1}]
  %s4 = inlined_call_operand.vmem [shape: f32[1,8,1], index: 4, kind: output, shape index: {2}]
  %5 = xla_tuple %s2, %s3, %s4
  %s6 = sld [smem:[#allocation0]]
  $region38: #{abstract_dice_loss.1} parent=0
    _
  %s8 = ssub.s32 1, %s6
  %s9 = scalar_select 0, %s8, %s6
  // Predicated region
  $region2: #{abstract_dice_loss.1} parent=0 // pred_check
    _
  $region3: #{abstract_dice_loss.1} parent=0 // pred_check_branch
    %11 = sbr.rel (0) target = $region5
  $region4: #{abstract_dice_loss.1} parent=0 // pred_region
    %s12 = sadd.s32 0, 0
    %p13 = scmp.lt.s32.totalorder %s12, 0
    %s14 = scalar_select %p13, %s12, 0
    %s15 = smul.u32 2, %s14
    %p16 = scmp.lt.s32.totalorder %s15, 1
    %s17 = scalar_select %p16, %s15, 1
    %s18 = smul.addr %s17, 8
    %s19 = scalar_lea.vmem %s0, %s18
    %s20 = sadd.s32 0, 0
    %p21 = scmp.lt.s32.totalorder %s20, 0
    %s22 = scalar_select %p21, %s20, 0
    %s23 = smul.u32 2, %s22
  $region5: #{abstract_dice_loss.1} parent=0 // pred_fallthru
    _
  // Predicated region
  $region6: #{abstract_dice_loss.1} parent=0 // pred_check
    _
  $region7: #{abstract_dice_loss.1} parent=0 // pred_check_branch
    %25 = sbr.rel (0) target = $region9
  $region8: #{abstract_dice_loss.1} parent=0 // pred_region
    %s26 = sadd.s32 0, 0
    %p27 = scmp.lt.s32.totalorder %s26, 0
    %s28 = scalar_select %p27, %s26, 0
    %s29 = smul.u32 2, %s28
    %p30 = scmp.lt.s32.totalorder %s29, 1
    %s31 = scalar_select %p30, %s29, 1
    %s32 = smul.addr %s31, 8
    %s33 = scalar_lea.vmem %s1, %s32
    %s34 = sadd.s32 0, 0
    %p35 = scmp.lt.s32.totalorder %s34, 0
    %s36 = scalar_select %p35, %s34, 0
    %s37 = smul.u32 2, %s36
  $region9: #{abstract_dice_loss.1} parent=0 // pred_fallthru
    _
  %s38 = sadd.s32 0, 0
  %p39 = scmp.lt.s32.totalorder %s38, 0
  %s40 = scalar_select %p39, %s38, 0
  %s41 = smul.u32 2, %s40
  %p42 = scmp.lt.s32.totalorder %s41, 1
  %s43 = scalar_select %p42, %s41, 1
  %s44 = smul.addr %s43, 8
  %s45 = scalar_lea.vmem %s0, %s44
  %s46 = sadd.s32 0, 0
  %p47 = scmp.lt.s32.totalorder %s46, 0
  %s48 = scalar_select %p47, %s46, 0
  %s49 = smul.u32 2, %s48
  %p50 = scmp.lt.s32.totalorder %s49, 1
  %s51 = scalar_select %p50, %s49, 1
  %s52 = smul.addr %s51, 8
  %s53 = scalar_lea.vmem %s1, %s52
  %s54 = sadd.s32 0, 0
  %p55 = scmp.lt.s32.totalorder %s54, 0
  %s56 = scalar_select %p55, %s54, 0
  %s57 = smul.u32 2, %s56
  %p58 = scmp.lt.s32.totalorder %s57, 1
  %s59 = scalar_select %p58, %s57, 1
  %s60 = smul.addr %s59, 8
  %s61 = scalar_lea.vmem %s0, %s60
  %s62 = sadd.s32 0, 0
  %p63 = scmp.lt.s32.totalorder %s62, 0
  %s64 = scalar_select %p63, %s62, 0
  %s65 = smul.u32 2, %s64
  %s66 = sadd.s32 0, 0
  %p67 = scmp.lt.s32.totalorder %s66, 0
  %s68 = scalar_select %p67, %s66, 0
  %s69 = smul.u32 2, %s68
  %p70 = scmp.lt.s32.totalorder %s69, 1
  %s71 = scalar_select %p70, %s69, 1
  %s72 = smul.addr %s71, 8
  %s73 = scalar_lea.vmem %s1, %s72
  %s74 = sadd.s32 0, 0
  %p75 = scmp.lt.s32.totalorder %s74, 0
  %s76 = scalar_select %p75, %s74, 0
  %s77 = smul.u32 2, %s76
  %p78 = scmp.eq.s32.totalorder 0, 0
  // Predicated region
  $region10: #{abstract_dice_loss.1} parent=0 // pred_check
    %p79 = pneg %p78
  $region11: #{abstract_dice_loss.1} parent=0 // pred_check_branch
    %81 = sbr.rel (%p79) target = $region13
  $region12: #{abstract_dice_loss.1} parent=0 // pred_region
    %vm82 = vcmask 7168
    %83 = vst.msk [vmem:[%s2] sm:$0xff] %vm82, 0.0
    %84 = vst.msk [vmem:[%s3] sm:$0xff] %vm82, 0.0
    %85 = vst.msk [vmem:[%s4] sm:$0xff] %vm82, 0.0
  $region13: #{abstract_dice_loss.1} parent=0 // pred_fallthru
    _
  %v86 = vld [vmem:[%s61] sm:$0xff]
  %v87 = vld [vmem:[%s61 + $0x8] sm:$0xff]
  %v88 = vld [vmem:[%s73] sm:$0xff]
  %v89 = vld [vmem:[%s73 + $0x8] sm:$0xff]
  %v90 = vmul.f32 %v86, 0.5
  %v91 = vmul.f32 %v87, 0.5
  %v92 = vtanh.pop %v90
  %v93 = vtanh.pop %v91
  %v94 = vmul.f32 %v92, 0.5
  %v95 = vmul.f32 %v93, 0.5
  %v96 = vadd.f32 %v94, 0.5
  %v97 = vadd.f32 %v95, 0.5
  %v98 = vld [vmem:[%s2] sm:$0xff]
  %v99 = vmul.f32 %v96, %v88
  %v100 = vmul.f32 %v97, %v89
  %v101 = vadd.f32 %v99, %v100
  %102 = vadd.xlane.f32.xlu0 %v101
  %v103 = vpop.xlane.xlu0 %102
  %v104 = vadd.f32 %v98, %v103
  %vm105 = vcmask 7168
  %106 = vst.msk [vmem:[%s2] sm:$0xff] %vm105, %v104
  %v107 = vld [vmem:[%s3] sm:$0xff]
  %v108 = vmul.f32 %v96, %v96
  %v109 = vmul.f32 %v97, %v97
  %v110 = vadd.f32 %v108, %v109
  %111 = vadd.xlane.f32.xlu0 %v110
  %v112 = vpop.xlane.xlu0 %111
  %v113 = vadd.f32 %v107, %v112
  %114 = vst.msk [vmem:[%s3] sm:$0xff] %vm105, %v113
  %v115 = vld [vmem:[%s4] sm:$0xff]
  %v116 = vmul.f32 %v88, %v88
  %v117 = vmul.f32 %v89, %v89
  %v118 = vadd.f32 %v116, %v117
  %119 = vadd.xlane.f32.xlu0 %v118
  %v120 = vpop.xlane.xlu0 %119
  %v121 = vadd.f32 %v115, %v120
  %122 = vst.msk [vmem:[%s4] sm:$0xff] %vm105, %v121
  // Predicated region
  $region14: #{abstract_dice_loss.1} parent=0 // pred_check
    _
  $region15: #{abstract_dice_loss.1} parent=0 // pred_check_branch
    %124 = sbr.rel (0) target = $region17
  $region16: #{abstract_dice_loss.1} parent=0 // pred_region
    _
  $region17: #{abstract_dice_loss.1} parent=0 // pred_fallthru
    _
  // Predicated region
  $region18: #{abstract_dice_loss.1} parent=0 // pred_check
    _
  $region19: #{abstract_dice_loss.1} parent=0 // pred_check_branch
    %126 = sbr.rel (0) target = $region21
  $region20: #{abstract_dice_loss.1} parent=0 // pred_region
    _
  $region21: #{abstract_dice_loss.1} parent=0 // pred_fallthru
    _
  // Predicated region
  $region22: #{abstract_dice_loss.1} parent=0 // pred_check
    _
  $region23: #{abstract_dice_loss.1} parent=0 // pred_check_branch
    %128 = sbr.rel (0) target = $region25
  $region24: #{abstract_dice_loss.1} parent=0 // pred_region
    _
  $region25: #{abstract_dice_loss.1} parent=0 // pred_fallthru
    _
  // Predicated region
  $region26: #{abstract_dice_loss.1} parent=0 // pred_check
    _
  $region27: #{abstract_dice_loss.1} parent=0 // pred_check_branch
    %130 = sbr.rel (0) target = $region29
  $region28: #{abstract_dice_loss.1} parent=0 // pred_region
    _
  $region29: #{abstract_dice_loss.1} parent=0 // pred_fallthru
    _
  // Predicated region
  $region30: #{abstract_dice_loss.1} parent=0 // pred_check
    _
  $region31: #{abstract_dice_loss.1} parent=0 // pred_check_branch
    %132 = sbr.rel (0) target = $region33
  $region32: #{abstract_dice_loss.1} parent=0 // pred_region
    _
  $region33: #{abstract_dice_loss.1} parent=0 // pred_fallthru
    _
  // Predicated region
  $region34: #{abstract_dice_loss.1} parent=0 // pred_check
    _
  $region35: #{abstract_dice_loss.1} parent=0 // pred_check_branch
    %134 = sbr.rel (0) target = $region37
  $region36: #{abstract_dice_loss.1} parent=0 // pred_region
    _
  $region37: #{abstract_dice_loss.1} parent=0 // pred_fallthru
    _

</llo_original>
